<compile_context>
chip_gen: v5e
topology: v5e:2x2
jax: 0.10.0
libtpu: 0.0.40
codegen_flags: <defaults>
</compile_context>

<pallas_src>
import functools

import jax
import jax.numpy as jnp
from jax import lax
from jax.experimental import pallas as pl
from jax.experimental.pallas import tpu as pltpu


# Fits comfortably inside v7x's 64 MiB physical VMEM (and v5e/v6e's 128 MiB).
_VMEM_LIMIT = 48 * 1024 * 1024


def _tile(dim, preferred, align):
    """Largest multiple of `align` that divides `dim` and is <= `preferred`.

    Falls back to the full dimension (always a legal BlockSpec block size)."""
    c = (preferred // align) * align
    while c >= align:
        if dim % c == 0:
            return c
        c -= align
    return dim


# --------------------------------------------------------------------------
# Kernel 1: tiled matmul  (M, K) @ (K, N) -> (M, N)        (used for to_qkv)
# --------------------------------------------------------------------------
def _matmul_kernel(x_ref, w_ref, o_ref, acc_ref):
    @pl.when(pl.program_id(2) == 0)
    def _init():
        acc_ref[...] = jnp.zeros(acc_ref.shape, jnp.float32)

    acc_ref[...] += jnp.dot(x_ref[...], w_ref[...],
                            preferred_element_type=jnp.float32)

    @pl.when(pl.program_id(2) == pl.num_programs(2) - 1)
    def _finish():
        o_ref[...] = acc_ref[...].astype(o_ref.dtype)


def pallas_matmul(x, w):
    M, K = x.shape
    K2, N = w.shape
    assert K == K2
    tm = _tile(M, 256, 8)      # sublane dim: multiple of 8 (or full)
    tn = _tile(N, 512, 128)    # lane dim: multiple of 128 (or full)
    tk = _tile(K, 512, 128)    # contraction: lane of x / sublane of w
    grid = (M // tm, N // tn, K // tk)
    cost = pl.CostEstimate(
        flops=2 * M * N * K,
        transcendentals=0,
        bytes_accessed=4 * (M * K + K * N + M * N),
    )
    return pl.pallas_call(
        _matmul_kernel,
        out_shape=jax.ShapeDtypeStruct((M, N), x.dtype),
        grid=grid,
        in_specs=[
            pl.BlockSpec((tm, tk), lambda i, j, k: (i, k)),
            pl.BlockSpec((tk, tn), lambda i, j, k: (k, j)),
        ],
        out_specs=pl.BlockSpec((tm, tn), lambda i, j, k: (i, j)),
        scratch_shapes=[pltpu.VMEM((tm, tn), jnp.float32)],
        compiler_params=pltpu.CompilerParams(
            dimension_semantics=("parallel", "parallel", "arbitrary"),
            vmem_limit_bytes=_VMEM_LIMIT,
        ),
        cost_estimate=cost,
    )(x, w)


# --------------------------------------------------------------------------
# Kernel 2: flash-style attention
#   qkv   : (B, N, 3, H, Dh)  -- passed three times; index_maps pick q/k/v,
#                                so no XLA split / transpose is needed.
#   out   : (B, H, N, Dh)      softmax(q k^T * scale) v, online softmax.
#   grid  : (B, N//tq, N//tkv) with kv as the innermost "arbitrary" axis.
#   All heads of one batch are processed per grid step (amortizes the ~0.35us
#   per-step overhead and keeps MXU work back-to-back).
# --------------------------------------------------------------------------
def _flash_attn_kernel(q_ref, k_ref, v_ref, o_ref, m_ref, l_ref, acc_ref,
                       *, scale, heads):
    kv_i = pl.program_id(2)

    @pl.when(kv_i == 0)
    def _init():
        m_ref[...] = jnp.full(m_ref.shape, -jnp.inf, jnp.float32)
        l_ref[...] = jnp.zeros(l_ref.shape, jnp.float32)
        acc_ref[...] = jnp.zeros(acc_ref.shape, jnp.float32)

    q = q_ref[0, :, 0, :, :]   # (tq,  H, Dh)
    k = k_ref[0, :, 0, :, :]   # (tkv, H, Dh)
    v = v_ref[0, :, 0, :, :]   # (tkv, H, Dh)

    for h in range(heads):     # static unroll: all heads in one grid step
        q_h = q[:, h, :]       # (tq,  Dh)
        k_h = k[:, h, :]       # (tkv, Dh)
        v_h = v[:, h, :]       # (tkv, Dh)

        # scores (tq, tkv) = q_h @ k_h^T  (no materialized transpose)
        s = lax.dot_general(q_h, k_h, (((1,), (1,)), ((), ())),
                            preferred_element_type=jnp.float32) * scale

        m_prev = m_ref[h]                                          # (tq, 1)
        m_new = jnp.maximum(m_prev, jnp.max(s, axis=-1, keepdims=True))
        alpha = jnp.exp(m_prev - m_new)                            # (tq, 1)
        p = jnp.exp(s - m_new)                                     # (tq, tkv)
        l_ref[h] = alpha * l_ref[h] + jnp.sum(p, axis=-1, keepdims=True)
        pv = jnp.dot(p.astype(v_h.dtype), v_h,
                     preferred_element_type=jnp.float32)           # (tq, Dh)
        acc_ref[h] = alpha * acc_ref[h] + pv
        m_ref[h] = m_new

    @pl.when(kv_i == pl.num_programs(2) - 1)
    def _finish():
        # EUP reciprocal (approx) + multiply instead of a divide.
        inv_l = pl.reciprocal(l_ref[...], approx=True)             # (H, tq, 1)
        o_ref[0] = (acc_ref[...] * inv_l).astype(o_ref.dtype)


def pallas_flash_attention(qkv, heads, scale):
    B, N, three, H, Dh = qkv.shape
    assert three == 3 and H == heads
    tq = _tile(N, 256, 8)
    tkv = _tile(N, 512, 8)
    grid = (B, N // tq, N // tkv)

    q_spec = pl.BlockSpec((1, tq, 1, H, Dh), lambda b, qi, ki: (b, qi, 0, 0, 0))
    k_spec = pl.BlockSpec((1, tkv, 1, H, Dh), lambda b, qi, ki: (b, ki, 1, 0, 0))
    v_spec = pl.BlockSpec((1, tkv, 1, H, Dh), lambda b, qi, ki: (b, ki, 2, 0, 0))
    o_spec = pl.BlockSpec((1, H, tq, Dh), lambda b, qi, ki: (b, 0, qi, 0))

    cost = pl.CostEstimate(
        flops=4 * B * H * N * N * Dh,
        transcendentals=B * H * N * N,
        bytes_accessed=4 * (3 * B * N * H * Dh + B * N * H * Dh),
    )
    return pl.pallas_call(
        functools.partial(_flash_attn_kernel, scale=scale, heads=H),
        out_shape=jax.ShapeDtypeStruct((B, H, N, Dh), qkv.dtype),
        grid=grid,
        in_specs=[q_spec, k_spec, v_spec],
        out_specs=o_spec,
        scratch_shapes=[
            pltpu.VMEM((H, tq, 1), jnp.float32),    # running max
            pltpu.VMEM((H, tq, 1), jnp.float32),    # running sum
            pltpu.VMEM((H, tq, Dh), jnp.float32),   # output accumulator
        ],
        compiler_params=pltpu.CompilerParams(
            dimension_semantics=("parallel", "parallel", "arbitrary"),
            vmem_limit_bytes=_VMEM_LIMIT,
        ),
        cost_estimate=cost,
    )(qkv, qkv, qkv)


# --------------------------------------------------------------------------
# Kernel 3: output projection with the head merge fused as a K-reduction:
#   out[b, n, :] = sum_h attn[b, h, n, :] @ W_out[h*Dh:(h+1)*Dh, :] + bias
# The output block is the full lane-dense D-wide slab (no Dh-wide masked
# stores, no XLA transpose of the attention output).
# --------------------------------------------------------------------------
def _out_proj_kernel(a_ref, w_ref, b_ref, o_ref, acc_ref):
    h = pl.program_id(3)

    @pl.when(h == 0)
    def _init():
        acc_ref[...] = jnp.zeros(acc_ref.shape, jnp.float32)

    acc_ref[...] += jnp.dot(a_ref[0, 0], w_ref[0],
                            preferred_element_type=jnp.float32)

    @pl.when(h == pl.num_programs(3) - 1)
    def _finish():
        o_ref[0] = (acc_ref[...] + b_ref[...]).astype(o_ref.dtype)


def pallas_out_projection(attn_out, w_out, b_out):
    B, H, N, Dh = attn_out.shape
    D = H * Dh
    assert w_out.shape == (D, D)
    w3 = w_out.reshape(H, Dh, D)   # rows of W_out are (h, d)-ordered
    b2 = b_out.reshape(1, D)

    tn = _tile(N, 256, 8)
    td = _tile(D, 512, 128)
    grid = (B, N // tn, D // td, H)

    cost = pl.CostEstimate(
        flops=2 * B * N * D * D,
        transcendentals=0,
        bytes_accessed=4 * (2 * B * N * D + D * D + D),
    )
    return pl.pallas_call(
        _out_proj_kernel,
        out_shape=jax.ShapeDtypeStruct((B, N, D), attn_out.dtype),
        grid=grid,
        in_specs=[
            pl.BlockSpec((1, 1, tn, Dh), lambda b, i, j, h: (b, h, i, 0)),
            pl.BlockSpec((1, Dh, td), lambda b, i, j, h: (h, 0, j)),
            pl.BlockSpec((1, td), lambda b, i, j, h: (0, j)),
        ],
        out_specs=pl.BlockSpec((1, tn, td), lambda b, i, j, h: (b, i, j)),
        scratch_shapes=[pltpu.VMEM((tn, td), jnp.float32)],
        compiler_params=pltpu.CompilerParams(
            dimension_semantics=("parallel", "parallel", "parallel", "arbitrary"),
            vmem_limit_bytes=_VMEM_LIMIT,
        ),
        cost_estimate=cost,
    )(attn_out, w3, b2)


# --------------------------------------------------------------------------
# Full Attention module forward (mask=None, return_tok=False, dropout=0)
# --------------------------------------------------------------------------
def attention_forward(x, w_qkv, w_out, b_out, heads, scale):
    B, N, D = x.shape
    Dh = D // heads

    # to_qkv: Linear(dim, 3*dim, bias=False)
    qkv = pallas_matmul(x.reshape(B * N, D), w_qkv)         # (B*N, 3D)
    qkv = qkv.reshape(B, N, 3, heads, Dh)                   # free contiguous view

    # attention: heads split/merge handled entirely by BlockSpec index_maps
    attn = pallas_flash_attention(qkv, heads, scale)        # (B, H, N, Dh)

    # to_out: Linear(dim, dim) + Dropout(0.0); head merge fused in the kernel
    out = pallas_out_projection(attn, w_out, b_out)         # (B, N, D)
    return out


# --------------------------------------------------------------------------
# Pure-JAX reference for correctness check
# --------------------------------------------------------------------------
def attention_reference(x, w_qkv, w_out, b_out, heads, scale):
    B, N, D = x.shape
    Dh = D // heads
    qkv = x @ w_qkv
    q, k, v = jnp.split(qkv, 3, axis=-1)
    q = q.reshape(B, N, heads, Dh).transpose(0, 2, 1, 3)
    k = k.reshape(B, N, heads, Dh).transpose(0, 2, 1, 3)
    v = v.reshape(B, N, heads, Dh).transpose(0, 2, 1, 3)
    dots = jnp.einsum("bhid,bhjd->bhij", q, k) * scale
    attn = jax.nn.softmax(dots, axis=-1)
    out = jnp.einsum("bhij,bhjd->bhid", attn, v)
    out = out.transpose(0, 2, 1, 3).reshape(B, N, D)
    return out @ w_out + b_out


if __name__ == "__main__":
    # Small, module-consistent shapes
    B, N, D, H = 2, 8, 32, 8
    scale = D ** (-0.5)          # scale_with_head=False (module default)

    key = jax.random.PRNGKey(0)
    kx, kqkv, kwo, kbo = jax.random.split(key, 4)

    x = jax.random.normal(kx, (B, N, D), dtype=jnp.float32)

    # nn.Linear-style deterministic init (stored pre-transposed: [in, out])
    bound = 1.0 / (D ** 0.5)
    w_qkv = jax.random.uniform(kqkv, (D, 3 * D), jnp.float32, -bound, bound)
    w_out = jax.random.uniform(kwo, (D, D), jnp.float32, -bound, bound)
    b_out = jax.random.uniform(kbo, (D,), jnp.float32, -bound, bound)

    out = attention_forward(x, w_qkv, w_out, b_out, H, scale)
    out = jax.block_until_ready(out)

    ref = attention_reference(x, w_qkv, w_out, b_out, H, scale)
    assert out.shape == (B, N, D)
    # Tolerance accounts for the approximate EUP reciprocal (pl.reciprocal
    # approx=True) used for the softmax denominator.
    assert jnp.allclose(out, ref, atol=2e-2, rtol=2e-2), "mismatch vs reference"

    # TODO(synk): mask and return_tok branches not exercised (mask=None,
    # return_tok=False default path implemented).
    print("KERNEL_OK")
</pallas_src>

<mosaic_0001>
module attributes {stable_mosaic.version = 11 : i64} {
  func.func @_matmul_kernel(%arg0: i32, %arg1: i32, %arg2: i32, %arg3: memref<16x32xf32, #tpu.memory_space<vmem>>, %arg4: memref<32x96xf32, #tpu.memory_space<vmem>>, %arg5: memref<16x96xf32, #tpu.memory_space<vmem>>, %arg6: memref<16x96xf32, #tpu.memory_space<vmem>>) attributes {dimension_semantics = [#tpu.dimension_semantics<parallel>, #tpu.dimension_semantics<parallel>, #tpu.dimension_semantics<arbitrary>], iteration_bounds = array<i64: 1, 1, 1>, scalar_prefetch = 0 : i64, scratch_operands = 1 : i64, tpu.core_type = #tpu.core_type<tc>, window_params = [{transform_indices = @transform_0, window_bounds = array<i64: 16, 32>}, {transform_indices = @transform_1, window_bounds = array<i64: 32, 96>}, {transform_indices = @transform_2, window_bounds = array<i64: 16, 96>}]} {
    %c0_i32 = arith.constant 0 : i32
    %0 = arith.cmpi eq, %arg2, %c0_i32 : i32
    %1 = arith.extui %0 : i1 to i32
    %c0_i32_0 = arith.constant 0 : i32
    %2 = arith.cmpi ne, %1, %c0_i32_0 : i32
    scf.if %2 {
      %cst_10 = arith.constant 0.000000e+00 : f32
      %12 = vector.broadcast %cst_10 : f32 to vector<16x96xf32>
      %c0_11 = arith.constant 0 : index
      %c0_12 = arith.constant 0 : index
      %13 = vector.load %arg6[%c0_11, %c0_12] : memref<16x96xf32, #tpu.memory_space<vmem>>, vector<16x96xf32>
      tpu.vector_store %arg6[%c0_11, %c0_12], %12 {strides = array<i32>} : memref<16x96xf32, #tpu.memory_space<vmem>>, vector<16x96xf32>,
    } else {
    }
    %c0 = arith.constant 0 : index
    %c0_1 = arith.constant 0 : index
    %3 = vector.load %arg6[%c0, %c0_1] : memref<16x96xf32, #tpu.memory_space<vmem>>, vector<16x96xf32>
    %c0_2 = arith.constant 0 : index
    %c0_3 = arith.constant 0 : index
    %4 = vector.load %arg3[%c0_2, %c0_3] : memref<16x32xf32, #tpu.memory_space<vmem>>, vector<16x32xf32>
    %c0_4 = arith.constant 0 : index
    %c0_5 = arith.constant 0 : index
    %5 = vector.load %arg4[%c0_4, %c0_5] : memref<32x96xf32, #tpu.memory_space<vmem>>, vector<32x96xf32>
    %cst = arith.constant dense<0.000000e+00> : vector<16x96xf32>
    %6 = tpu.matmul %4, %5, %cst {dimension_numbers = #tpu.dot_dimension_numbers<[1], [0], [0], [1], [0, 0, 1, 1], [], []>} : vector<16x32xf32>, vector<32x96xf32>, vector<16x96xf32> -> vector<16x96xf32>
    %7 = arith.addf %3, %6 : vector<16x96xf32>
    %c0_6 = arith.constant 0 : index
    %c0_7 = arith.constant 0 : index
    %8 = vector.load %arg6[%c0_6, %c0_7] : memref<16x96xf32, #tpu.memory_space<vmem>>, vector<16x96xf32>
    tpu.vector_store %arg6[%c0_6, %c0_7], %7 {strides = array<i32>} : memref<16x96xf32, #tpu.memory_space<vmem>>, vector<16x96xf32>,
    %c0_i32_8 = arith.constant 0 : i32
    %9 = arith.cmpi eq, %arg2, %c0_i32_8 : i32
    %10 = arith.extui %9 : i1 to i32
    %c0_i32_9 = arith.constant 0 : i32
    %11 = arith.cmpi ne, %10, %c0_i32_9 : i32
    scf.if %11 {
      %c0_10 = arith.constant 0 : index
      %c0_11 = arith.constant 0 : index
      %12 = vector.load %arg6[%c0_10, %c0_11] : memref<16x96xf32, #tpu.memory_space<vmem>>, vector<16x96xf32>
      %c0_12 = arith.constant 0 : index
      %c0_13 = arith.constant 0 : index
      %13 = vector.load %arg5[%c0_12, %c0_13] : memref<16x96xf32, #tpu.memory_space<vmem>>, vector<16x96xf32>
      tpu.vector_store %arg5[%c0_12, %c0_13], %12 {strides = array<i32>} : memref<16x96xf32, #tpu.memory_space<vmem>>, vector<16x96xf32>,
    } else {
    }
    return
  }
  func.func @transform_0(%arg0: i32, %arg1: i32, %arg2: i32) -> (i32, i32) {
    %c0_i32 = arith.constant 0 : i32
    return %arg0, %arg2 : i32, i32
  }
  func.func @transform_1(%arg0: i32, %arg1: i32, %arg2: i32) -> (i32, i32) {
    %c0_i32 = arith.constant 0 : i32
    return %arg2, %arg1 : i32, i32
  }
  func.func @transform_2(%arg0: i32, %arg1: i32, %arg2: i32) -> (i32, i32) {
    %c0_i32 = arith.constant 0 : i32
    return %arg0, %arg1 : i32, i32
  }
}

</mosaic_0001>

<llo_original>
// kernel: tpu_custom_call.1
$region0: #{tpu_custom_call.1}
  #allocation0 [shape = 'u32[]', space=smem, size = 0x4, offset = 0x4, fixed_abs, tag = 'smem constant byte address 0x4 - core index']
  #allocation1 [shape = 'u32[72,128]{1,0:T(1,128)}', space=vmem, size = 0x9000, scoped, tag = 'internal scratch']
  #allocation2 [shape = 'f32[16,96]{1,0:T(8,128)}', space=vmem, size = 0x2000, scoped, tag = 'scratch operand']
  %s0 = inlined_call_operand.hbm [shape: f32[16,32], index: 0, kind: input, shape index: {}]
  %s1 = inlined_call_operand.hbm [shape: f32[32,96], index: 1, kind: input, shape index: {}]
  %s2 = inlined_call_operand.hbm [shape: f32[16,96], index: 2, kind: output, shape index: {}]
  %s3 = sld [smem:[#allocation0]]
  $region34: #{tpu_custom_call.1} parent=0
    _
  %s5 = ssub.s32 1, %s3
  %s6 = scalar_select 0, %s5, %s3
  $region1: #{tpu_custom_call.1} parent=0
    #allocation3 [shape = 'u8[8192]{0}', space=vmem, size = 0x2000, scoped, tag = 'input window, operand 0, single buffered']
    #allocation4 [shape = 's32[1]{0}', space=sflag, size = 0x4, scoped, tag = 'scoped memory for tpu_custom_call.1']
    #allocation5 [shape = 's32[1]{0}', space=sflag, size = 0x4, scoped, tag = 'scoped memory for tpu_custom_call.1']
    #allocation6 [shape = 'u8[16384]{0}', space=vmem, size = 0x4000, scoped, tag = 'input window, operand 1, single buffered']
    #allocation7 [shape = 's32[1]{0}', space=sflag, size = 0x4, scoped, tag = 'scoped memory for tpu_custom_call.1']
    #allocation8 [shape = 'u8[8192]{0}', space=vmem, size = 0x2000, scoped, tag = 'output window, operand 0, single buffered']
    %7 = vsyncpa [#allocation4], 0
    %8 = vsyncpa [#allocation7], 0
    %9 = vsyncpa [#allocation5], 0
    // Predicated region
    $region2: #{tpu_custom_call.1} parent=1 // pred_check
      _
    $region3: #{tpu_custom_call.1} parent=1 // pred_check_branch
      %11 = sbr.rel (0) target = $region5
    $region4: #{tpu_custom_call.1} parent=1 // pred_region
      %13 = vsyncadd [#allocation4], 0
      %s14 = sshll.u32 %s0, 4
      %s15 = int_to_ptr.hbm [resolvable:$true] %s14
      %s16 = sshll.u32 [#allocation3], 4
      %s17 = int_to_ptr.vmem [resolvable:$true] %s16
      %22 = dma.hbm_to_vmem [thread:$0]  %s15, 256, %s17, [#allocation4], 128, 128, 8
    $region5: #{tpu_custom_call.1} parent=1 // pred_fallthru
      _
    // Predicated region
    $region6: #{tpu_custom_call.1} parent=1 // pred_check
      _
    $region7: #{tpu_custom_call.1} parent=1 // pred_check_branch
      %24 = sbr.rel (0) target = $region9
    $region8: #{tpu_custom_call.1} parent=1 // pred_region
      %26 = vsyncadd [#allocation7], 0
      %s27 = sshll.u32 %s1, 4
      %s28 = int_to_ptr.hbm [resolvable:$true] %s27
      %s29 = sshll.u32 [#allocation6], 4
      %s30 = int_to_ptr.vmem [resolvable:$true] %s29
      %35 = dma.hbm_to_vmem [thread:$0]  %s28, 512, %s30, [#allocation7], 128, 128, 8
    $region9: #{tpu_custom_call.1} parent=1 // pred_fallthru
      _
    // Predicated region
    $region10: #{tpu_custom_call.1} parent=1 // pred_check
      _
    $region11: #{tpu_custom_call.1} parent=1 // pred_check_branch
      %37 = sbr.rel (0) target = $region13
    $region12: #{tpu_custom_call.1} parent=1 // pred_region
      %39 = dma.done [#allocation4], 256
    $region13: #{tpu_custom_call.1} parent=1 // pred_fallthru
      _
    // Predicated region
    $region14: #{tpu_custom_call.1} parent=1 // pred_check
      _
    $region15: #{tpu_custom_call.1} parent=1 // pred_check_branch
      %41 = sbr.rel (0) target = $region17
    $region16: #{tpu_custom_call.1} parent=1 // pred_region
      %43 = dma.done [#allocation7], 512
    $region17: #{tpu_custom_call.1} parent=1 // pred_fallthru
      _
    %p44 = scmp.eq.s32.totalorder 0, 0
    // Predicated region
    $region18: #{tpu_custom_call.1} parent=1 // pred_check
      %p45 = pneg %p44
    $region19: #{tpu_custom_call.1} parent=1 // pred_check_branch
      %47 = sbr.rel (%p45) target = $region21
    $region20: #{tpu_custom_call.1} parent=1 // pred_region
      %vm48 = vcmask 785408
      %49 = vst.msk [vmem:[#allocation2] sm:$0xff] %vm48, 0.0
      %50 = vst.msk [vmem:[#allocation2 + $0x8] sm:$0xff] %vm48, 0.0
    $region21: #{tpu_custom_call.1} parent=1 // pred_fallthru
      _
    %v51 = vld [vmem:[#allocation2] sm:$0xff]
    %v52 = vld [vmem:[#allocation2 + $0x8] sm:$0xff]
    %v53 = vld [vmem:[#allocation3] sm:$0xff]
    %v54 = vld [vmem:[#allocation3 + $0x8] sm:$0xff]
    %v55 = vld [vmem:[#allocation6] sm:$0xff]
    %v56 = vld [vmem:[#allocation6 + $0x8] sm:$0xff]
    %v57 = vld [vmem:[#allocation6 + $0x10] sm:$0xff]
    %v58 = vld [vmem:[#allocation6 + $0x18] sm:$0xff]
    %vm59 = vcmask 261120
    %v61 = vsel %vm59, %v53, 0
    %v64 = vsel %vm59, %v54, 0
    %66 = vmatpush.msra.mxu0 0.0
    %67 = vmatpush.msra.mxu0 0.0
    %68 = vmatpush.msra.mxu0 0.0
    %69 = vmatpush.msra.mxu0 0.0
    %70 = vmatpush.msra.mxu0 0.0
    %71 = vmatpush.msra.mxu0 0.0
    %72 = vmatpush.msra.mxu0 0.0
    %73 = vmatpush.msra.mxu0 0.0
    %74 = vmatpush.msra.mxu0 0.0
    %75 = vmatpush.msra.mxu0 0.0
    %76 = vmatpush.msra.mxu0 0.0
    %77 = vmatpush.msra.mxu0 0.0
    %78 = vmatpush.msra.mxu0 %v58
    %79 = vmatpush.msra.mxu0 %v57
    %80 = vmatpush.msra.mxu0 %v56
    %81 = vmatpush.msra.mxu0 %v55
    %82 = vmatmul.f32.gmra.mxu0 %v61
    %v83 = vpop.f32.mrf.mxu0
    %v84 = vadd.f32 0.0, %v83
    %85 = vmatmul.f32.gmra.mxu0 %v64
    %v86 = vpop.f32.mrf.mxu0
    %v87 = vadd.f32 0.0, %v86
    %88 = vdwg.mxu0
    %v89 = vadd.f32 %v51, %v84
    %v90 = vadd.f32 %v52, %v87
    %vm91 = vcmask 785408
    %92 = vst.msk [vmem:[#allocation2] sm:$0xff] %vm91, %v89
    %93 = vst.msk [vmem:[#allocation2 + $0x8] sm:$0xff] %vm91, %v90
    // Predicated region
    $region22: #{tpu_custom_call.1} parent=1 // pred_check
      %p94 = pneg %p44
    $region23: #{tpu_custom_call.1} parent=1 // pred_check_branch
      %96 = sbr.rel (%p94) target = $region25
    $region24: #{tpu_custom_call.1} parent=1 // pred_region
      %v97 = vld [vmem:[#allocation2] sm:$0xff]
      %v98 = vld [vmem:[#allocation2 + $0x8] sm:$0xff]
      %99 = vst.msk [vmem:[#allocation8] sm:$0xff] %vm91, %v97
      %100 = vst.msk [vmem:[#allocation8 + $0x8] sm:$0xff] %vm91, %v98
    $region25: #{tpu_custom_call.1} parent=1 // pred_fallthru
      _
    // Predicated region
    $region26: #{tpu_custom_call.1} parent=1 // pred_check
      _
    $region27: #{tpu_custom_call.1} parent=1 // pred_check_branch
      %102 = sbr.rel (0) target = $region29
    $region28: #{tpu_custom_call.1} parent=1 // pred_region
      %104 = vsyncadd [#allocation5], 0
      %s105 = sshll.u32 [#allocation8], 4
      %s106 = int_to_ptr.vmem [resolvable:$true] %s105
      %s107 = sshll.u32 %s2, 4
      %s108 = int_to_ptr.hbm [resolvable:$true] %s107
      %113 = dma.vmem_to_hbm [thread:$0]  %s106, 256, %s108, [#allocation5], 128, 128, 8
    $region29: #{tpu_custom_call.1} parent=1 // pred_fallthru
      _
    // Predicated region
    $region30: #{tpu_custom_call.1} parent=1 // pred_check
      _
    $region31: #{tpu_custom_call.1} parent=1 // pred_check_branch
      %115 = sbr.rel (0) target = $region33
    $region32: #{tpu_custom_call.1} parent=1 // pred_region
      %117 = dma.done [#allocation5], 256
    $region33: #{tpu_custom_call.1} parent=1 // pred_fallthru
      _
    %118 = vsyncpa [#allocation4], 1
    %119 = vsyncpa [#allocation7], 1
    %120 = vsyncpa [#allocation5], 1

</llo_original>
